<compile_context>
chip_gen: v7x
topology: tpu7x:2x2x1
jax: 0.10.0
libtpu: 0.0.40
codegen_flags: <defaults>
</compile_context>

<pallas_src>
import functools

import jax
import jax.numpy as jnp
from jax import lax
from jax.experimental import pallas as pl
from jax.experimental.pallas import tpu as pltpu


def _round_up(x: int, m: int) -> int:
    return ((x + m - 1) // m) * m


def _physical_vmem_bytes() -> int:
    """Physical VMEM per TensorCore; conservative fallback = v7x (64 MiB)."""
    try:
        return int(pltpu.get_tpu_info().vmem_capacity_bytes)
    except Exception:
        return 64 << 20


def _default_num_cores() -> int:
    """2 only where a chip has two TensorCores worth splitting over (v7x)."""
    try:
        kind = jax.devices()[0].device_kind.lower()
    except Exception:
        return 1
    return 2 if ("v7" in kind or "7x" in kind) else 1


def _ce_sum_kernel(logits_ref, tgt_ref, out_ref, acc_ref, *, n_rows: int):
    """Per-core partial sum of [logsumexp(x_n) - x_n[target_n]] over its rows."""
    c = pl.program_id(0)            # "parallel" (core) axis
    i = pl.program_id(1)            # "arbitrary" (row-block) axis
    n_inner = pl.num_programs(1)
    tile_n = logits_ref.shape[0]

    @pl.when(i == 0)
    def _():
        acc_ref[...] = jnp.zeros_like(acc_ref)

    x = logits_ref[...]             # (tile_n, C), native dtype (f32 or bf16)
    t = tgt_ref[...]                # (tile_n, 1), int32

    # One-hot pick in the raw dtype (exact: exactly one nonzero per row),
    # cast only the per-row (tile_n, 1) result.  No dynamic gather on TPU.
    col = lax.broadcasted_iota(jnp.int32, x.shape, 1)
    picked = jnp.sum(jnp.where(col == t, x, 0),
                     axis=-1, keepdims=True).astype(jnp.float32)

    # Row max in the raw dtype (exact for max), f32 only for exp/log.
    m = jnp.max(x, axis=-1, keepdims=True).astype(jnp.float32)
    p = jnp.exp(x.astype(jnp.float32) - m)
    lse = m + jnp.log(jnp.sum(p, axis=-1, keepdims=True))

    # Row-validity mask: the grid may over-cover N (cdiv + core split with
    # clamped index_map) and the last block may be partial.  where() is a
    # select, so NaN/Inf from garbage rows does not propagate.
    block_idx = c * n_inner + i                       # un-clamped block id
    row0 = block_idx * tile_n
    rows = row0 + lax.broadcasted_iota(jnp.int32, (tile_n, 1), 0)
    valid = rows < n_rows

    # One cross-sublane reduction per step into a tiny (1,1) accumulator
    # (XLU slot is otherwise idle); ~4x fewer VALU ops than a (tile_n,1)
    # vector accumulator and 512 KiB of VMEM back.
    step = jnp.sum(jnp.where(valid, lse - picked, 0.0), keepdims=True)  # (1,1)
    acc_ref[...] += step

    @pl.when(i == n_inner - 1)
    def _():
        out_ref[0] = acc_ref[...]


def label_smoothing_cross_entropy(logits: jax.Array, targets: jax.Array,
                                  *, num_cores: int | None = None) -> jax.Array:
    """Equivalent of LabelSmoothingCrossEntropy.forward (mean reduction).

    logits:  (..., C) float (f32 or bf16 in HBM; exp/log math is done in f32)
    targets: (...)    int   (class indices; ignore_index / negative targets
                             are not handled -- the reference forward never
                             exercises them)
    """
    C = logits.shape[-1]
    logits2d = logits.reshape(-1, C)                    # .view(-1, C)
    tgt2d = targets.reshape(-1, 1).astype(jnp.int32)    # .view(-1) -> (N, 1)
    N = logits2d.shape[0]

    dtype = jnp.dtype(logits2d.dtype)
    itemsize = int(dtype.itemsize)
    # Native sublane packing: 8 rows for f32, 16 for bf16, 32 for int8/fp8.
    row_align = 8 * max(1, 4 // itemsize)

    if num_cores is None:
        num_cores = _default_num_cores()

    # Generation-aware VMEM budget for the streamed logits + f32 temporaries.
    phys = _physical_vmem_bytes()
    budget = min(int(phys * 0.55), 96 << 20)

    # Per-row VMEM cost: double-buffered input stream + f32 cast/exp temps
    # + the lane-padded (tile_n, 1) int32 target block (double-buffered).
    per_row = 2 * C * itemsize + 2 * C * 4 + 2 * 128 * 4
    tile_n = max(row_align, (budget // per_row) // row_align * row_align)
    share = _round_up(pl.cdiv(N, num_cores), row_align)  # one core's rows
    tile_n = min(tile_n, share, 32768)

    n_blocks = pl.cdiv(N, tile_n)
    n_inner = pl.cdiv(n_blocks, num_cores)
    last_block = n_blocks - 1

    def row_map(c, i):
        # Clamp fully-out-of-range grid points onto the last real block;
        # the in-kernel row mask zeroes their contribution.
        return (jnp.minimum(c * n_inner + i, last_block), 0)

    vmem_need = (2 * tile_n * C * itemsize        # logits stream (2 buffers)
                 + 2 * tile_n * C * 4             # f32 cast / exp temporaries
                 + 2 * tile_n * 128 * 4           # (tile_n, 1) targets, padded
                 + 4 * 8 * 128 * 4)               # accumulator + output blocks
    vmem_limit = int(min(max(vmem_need + (2 << 20), 16 << 20), int(phys * 0.9)))

    kernel = functools.partial(_ce_sum_kernel, n_rows=N)

    partials = pl.pallas_call(
        kernel,
        out_shape=jax.ShapeDtypeStruct((num_cores, 1, 1), jnp.float32),
        grid_spec=pltpu.PrefetchScalarGridSpec(
            num_scalar_prefetch=0,
            grid=(num_cores, n_inner),
            in_specs=[
                pl.BlockSpec((tile_n, C), row_map),
                pl.BlockSpec((tile_n, 1), row_map),
            ],
            out_specs=pl.BlockSpec((1, 1, 1), lambda c, i: (c, 0, 0)),
            scratch_shapes=[pltpu.VMEM((1, 1), jnp.float32)],
        ),
        compiler_params=pltpu.CompilerParams(
            dimension_semantics=("parallel", "arbitrary"),
            vmem_limit_bytes=vmem_limit),
    )(logits2d, tgt2d)

    # reduction='mean'
    return jnp.sum(partials) / N


def _reference(logits, targets):
    C = logits.shape[-1]
    x = logits.reshape(-1, C).astype(jnp.float32)
    t = targets.reshape(-1)
    lse = jax.scipy.special.logsumexp(x, axis=-1)
    picked = jnp.take_along_axis(x, t[:, None], axis=-1)[:, 0]
    return jnp.mean(lse - picked)


if __name__ == "__main__":
    key = jax.random.PRNGKey(0)
    k1, k2 = jax.random.split(key)
    # e.g. (batch=2, seq=8, classes=32) -> flattened to (16, 32)
    B, S, C = 2, 8, 32
    logits = jax.random.normal(k1, (B, S, C), dtype=jnp.float32)
    targets = jax.random.randint(k2, (B, S), 0, C, dtype=jnp.int32)

    loss = label_smoothing_cross_entropy(logits, targets)
    jax.block_until_ready(loss)

    ref = _reference(logits, targets)
    assert jnp.allclose(loss, ref, atol=1e-5, rtol=1e-5), (loss, ref)
    print("KERNEL_OK")
</pallas_src>

<mosaic_0001>
module attributes {stable_mosaic.version = 11 : i64} {
  func.func @_ce_sum_kernel(%arg0: i32, %arg1: i32, %arg2: memref<16x32xf32, #tpu.memory_space<vmem>>, %arg3: memref<16x1xi32, #tpu.memory_space<vmem>>, %arg4: memref<1x1x1xf32, #tpu.memory_space<vmem>>, %arg5: memref<1x1xf32, #tpu.memory_space<vmem>>) attributes {dimension_semantics = [#tpu.dimension_semantics<parallel>, #tpu.dimension_semantics<arbitrary>], iteration_bounds = array<i64: 1, 1>, scalar_prefetch = 0 : i64, scratch_operands = 1 : i64, tpu.core_type = #tpu.core_type<tc>, window_params = [{transform_indices = @transform_0, window_bounds = array<i64: 16, 32>}, {transform_indices = @transform_1, window_bounds = array<i64: 16, 1>}, {transform_indices = @transform_2, window_bounds = array<i64: 1, 1, 1>}]} {
    %c0_i32 = arith.constant 0 : i32
    %0 = arith.cmpi eq, %arg1, %c0_i32 : i32
    %1 = arith.extui %0 : i1 to i32
    %c0_i32_0 = arith.constant 0 : i32
    %2 = arith.cmpi ne, %1, %c0_i32_0 : i32
    scf.if %2 {
      %cst_16 = arith.constant 0.000000e+00 : f32
      %44 = vector.broadcast %cst_16 : f32 to vector<1x1xf32>
      %c0_17 = arith.constant 0 : index
      %c0_18 = arith.constant 0 : index
      %45 = vector.load %arg5[%c0_17, %c0_18] : memref<1x1xf32, #tpu.memory_space<vmem>>, vector<1x1xf32>
      tpu.vector_store %arg5[%c0_17, %c0_18], %44 {strides = array<i32>} : memref<1x1xf32, #tpu.memory_space<vmem>>, vector<1x1xf32>,
    } else {
    }
    %c0 = arith.constant 0 : index
    %c0_1 = arith.constant 0 : index
    %3 = vector.load %arg2[%c0, %c0_1] : memref<16x32xf32, #tpu.memory_space<vmem>>, vector<16x32xf32>
    %c0_2 = arith.constant 0 : index
    %c0_3 = arith.constant 0 : index
    %4 = vector.load %arg3[%c0_2, %c0_3] : memref<16x1xi32, #tpu.memory_space<vmem>>, vector<16x1xi32>
    %5 = tpu.iota {dimensions = array<i32: 1>} : vector<16x32xi32>
    %6 = vector.broadcast %4 : vector<16x1xi32> to vector<16x32xi32>
    %7 = arith.cmpi eq, %5, %6 : vector<16x32xi32>
    %c0_i32_4 = arith.constant 0 : i32
    %8 = arith.sitofp %c0_i32_4 : i32 to f32
    %9 = vector.broadcast %8 : f32 to vector<16x32xf32>
    %10 = arith.select %7, %3, %9 : vector<16x32xi1>, vector<16x32xf32>
    %cst = arith.constant dense<0.000000e+00> : vector<16xf32>
    %11 = vector.multi_reduction <add>, %10, %cst [1] : vector<16x32xf32> to vector<16xf32>
    %12 = vector.shape_cast %11 : vector<16xf32> to vector<16x1xf32>
    %cst_5 = arith.constant dense<0xFF800000> : vector<16xf32>
    %13 = vector.multi_reduction <maximumf>, %3, %cst_5 [1] : vector<16x32xf32> to vector<16xf32>
    %14 = vector.shape_cast %13 : vector<16xf32> to vector<16x1xf32>
    %15 = vector.broadcast %14 : vector<16x1xf32> to vector<16x32xf32>
    %16 = arith.subf %3, %15 : vector<16x32xf32>
    %17 = math.exp %16 : vector<16x32xf32>
    %cst_6 = arith.constant dense<0.000000e+00> : vector<16xf32>
    %18 = vector.multi_reduction <add>, %17, %cst_6 [1] : vector<16x32xf32> to vector<16xf32>
    %19 = vector.shape_cast %18 : vector<16xf32> to vector<16x1xf32>
    %20 = math.log %19 : vector<16x1xf32>
    %21 = arith.addf %14, %20 : vector<16x1xf32>
    %c1_i32 = arith.constant 1 : i32
    %22 = arith.muli %arg0, %c1_i32 : i32
    %23 = arith.addi %22, %arg1 : i32
    %c16_i32 = arith.constant 16 : i32
    %24 = arith.muli %23, %c16_i32 : i32
    %25 = tpu.iota {dimensions = array<i32: 0>} : vector<16x1xi32>
    %26 = vector.broadcast %24 : i32 to vector<16x1xi32>
    %27 = arith.addi %26, %25 : vector<16x1xi32>
    %c16_i32_7 = arith.constant 16 : i32
    %28 = vector.broadcast %c16_i32_7 : i32 to vector<16x1xi32>
    %29 = arith.cmpi slt, %27, %28 : vector<16x1xi32>
    %30 = arith.subf %21, %12 : vector<16x1xf32>
    %cst_8 = arith.constant 0.000000e+00 : f32
    %31 = vector.broadcast %cst_8 : f32 to vector<16x1xf32>
    %32 = arith.select %29, %30, %31 : vector<16x1xi1>, vector<16x1xf32>
    %33 = vector.shape_cast %32 : vector<16x1xf32> to vector<1x16x1xf32>
    %cst_9 = arith.constant dense<0.000000e+00> : vector<1xf32>
    %34 = vector.multi_reduction <add>, %33, %cst_9 [1, 2] : vector<1x16x1xf32> to vector<1xf32>
    %35 = vector.shape_cast %34 : vector<1xf32> to vector<1x1x1xf32>
    %36 = vector.extract %35[0, 0, 0] : f32 from vector<1x1x1xf32>
    %37 = vector.broadcast %36 : f32 to vector<1x1xf32>
    %c0_10 = arith.constant 0 : index
    %c0_11 = arith.constant 0 : index
    %38 = vector.load %arg5[%c0_10, %c0_11] : memref<1x1xf32, #tpu.memory_space<vmem>>, vector<1x1xf32>
    %39 = arith.addf %38, %37 : vector<1x1xf32>
    %c0_12 = arith.constant 0 : index
    %c0_13 = arith.constant 0 : index
    %40 = vector.load %arg5[%c0_12, %c0_13] : memref<1x1xf32, #tpu.memory_space<vmem>>, vector<1x1xf32>
    tpu.vector_store %arg5[%c0_12, %c0_13], %39 {strides = array<i32>} : memref<1x1xf32, #tpu.memory_space<vmem>>, vector<1x1xf32>,
    %c0_i32_14 = arith.constant 0 : i32
    %41 = arith.cmpi eq, %arg1, %c0_i32_14 : i32
    %42 = arith.extui %41 : i1 to i32
    %c0_i32_15 = arith.constant 0 : i32
    %43 = arith.cmpi ne, %42, %c0_i32_15 : i32
    scf.if %43 {
      %c0_16 = arith.constant 0 : index
      %c0_17 = arith.constant 0 : index
      %44 = vector.load %arg5[%c0_16, %c0_17] : memref<1x1xf32, #tpu.memory_space<vmem>>, vector<1x1xf32>
      %c0_18 = arith.constant 0 : index
      %c0_19 = arith.constant 0 : index
      %c0_20 = arith.constant 0 : index
      %45 = vector.load %arg4[%c0_18, %c0_19, %c0_20] : memref<1x1x1xf32, #tpu.memory_space<vmem>>, vector<1x1x1xf32>
      %46 = vector.shape_cast %45 : vector<1x1x1xf32> to vector<1x1xf32>
      %47 = vector.shape_cast %44 : vector<1x1xf32> to vector<1x1x1xf32>
      tpu.vector_store %arg4[%c0_18, %c0_19, %c0_20], %47 {strides = array<i32>} : memref<1x1x1xf32, #tpu.memory_space<vmem>>, vector<1x1x1xf32>,
    } else {
    }
    return
  }
  func.func @transform_0(%arg0: i32, %arg1: i32) -> (i32, i32) {
    %c1_i32 = arith.constant 1 : i32
    %0 = arith.muli %arg0, %c1_i32 : i32
    %1 = arith.addi %0, %arg1 : i32
    %c0_i32 = arith.constant 0 : i32
    %2 = arith.minsi %1, %c0_i32 : i32
    %c0_i32_0 = arith.constant 0 : i32
    %c0_i32_1 = arith.constant 0 : i32
    return %2, %c0_i32_0 : i32, i32
  }
  func.func @transform_1(%arg0: i32, %arg1: i32) -> (i32, i32) {
    %c1_i32 = arith.constant 1 : i32
    %0 = arith.muli %arg0, %c1_i32 : i32
    %1 = arith.addi %0, %arg1 : i32
    %c0_i32 = arith.constant 0 : i32
    %2 = arith.minsi %1, %c0_i32 : i32
    %c0_i32_0 = arith.constant 0 : i32
    %c0_i32_1 = arith.constant 0 : i32
    return %2, %c0_i32_0 : i32, i32
  }
  func.func @transform_2(%arg0: i32, %arg1: i32) -> (i32, i32, i32) {
    %c0_i32 = arith.constant 0 : i32
    %c0_i32_0 = arith.constant 0 : i32
    %c0_i32_1 = arith.constant 0 : i32
    return %arg0, %c0_i32, %c0_i32_0 : i32, i32, i32
  }
}

</mosaic_0001>

<llo_original>
// kernel: tpu_custom_call.1
$region0: #{tpu_custom_call.1}
  #allocation0 [shape = 'u32[]', space=smem, size = 0x4, offset = 0x4, fixed_abs, tag = 'smem constant byte address 0x4 - core index']
  #allocation1 [shape = 'u32[144,128]{1,0:T(1,128)}', space=vmem, size = 0x12000, scoped, tag = 'internal scratch']
  #allocation2 [shape = 'f32[1,1]{1,0:T(1,128)}', space=vmem, size = 0x200, scoped, tag = 'scratch operand']
  %s0 = inlined_call_operand.vmem [shape: f32[16,32], index: 0, kind: input, shape index: {}]
  %s1 = inlined_call_operand.vmem [shape: s32[16,1], index: 1, kind: input, shape index: {}]
  %s2 = inlined_call_operand.hbm [shape: f32[1,1,1], index: 2, kind: output, shape index: {}]
  %s3 = sld [smem:[#allocation0]]
  $region26: #{tpu_custom_call.1} parent=0
    _
  %s5 = ssub.s32 1, %s3
  %s6 = scalar_select 0, %s5, %s3
  $region1: #{tpu_custom_call.1} parent=0
    #allocation3 [shape = 'u8[512]{0}', space=vmem, size = 0x400, scoped, tag = 'output window, operand 0, single buffered']
    #allocation4 [shape = 's32[1]{0}', space=sflag, size = 0x4, scoped, tag = 'scoped memory for tpu_custom_call.1']
    %7 = vsyncpa [#allocation4], 0
    // Predicated region
    $region2: #{tpu_custom_call.1} parent=1 // pred_check
      _
    $region3: #{tpu_custom_call.1} parent=1 // pred_check_branch
      %9 = sbr.rel (0) target = $region5
    $region4: #{tpu_custom_call.1} parent=1 // pred_region
      %s10 = sadd.s32 0, 0
      %p11 = scmp.lt.s32.totalorder %s10, 0
      %s12 = scalar_select %p11, %s10, 0
      %s13 = smul.u32 2, %s12
      %p14 = scmp.lt.s32.totalorder %s13, 1
      %s15 = scalar_select %p14, %s13, 1
      %s16 = smul.addr %s15, 8
      %s17 = scalar_lea.vmem %s0, %s16
      %s18 = sadd.s32 0, 0
      %p19 = scmp.lt.s32.totalorder %s18, 0
      %s20 = scalar_select %p19, %s18, 0
      %s21 = smul.u32 2, %s20
    $region5: #{tpu_custom_call.1} parent=1 // pred_fallthru
      _
    // Predicated region
    $region6: #{tpu_custom_call.1} parent=1 // pred_check
      _
    $region7: #{tpu_custom_call.1} parent=1 // pred_check_branch
      %23 = sbr.rel (0) target = $region9
    $region8: #{tpu_custom_call.1} parent=1 // pred_region
      %s24 = sadd.s32 0, 0
      %p25 = scmp.lt.s32.totalorder %s24, 0
      %s26 = scalar_select %p25, %s24, 0
      %s27 = smul.u32 2, %s26
      %p28 = scmp.lt.s32.totalorder %s27, 1
      %s29 = scalar_select %p28, %s27, 1
      %s30 = smul.addr %s29, 8
      %s31 = scalar_lea.vmem %s1, %s30
      %s32 = sadd.s32 0, 0
      %p33 = scmp.lt.s32.totalorder %s32, 0
      %s34 = scalar_select %p33, %s32, 0
      %s35 = smul.u32 2, %s34
    $region9: #{tpu_custom_call.1} parent=1 // pred_fallthru
      _
    %s36 = sadd.s32 0, 0
    %p37 = scmp.lt.s32.totalorder %s36, 0
    %s38 = scalar_select %p37, %s36, 0
    %s39 = smul.u32 2, %s38
    %p40 = scmp.lt.s32.totalorder %s39, 1
    %s41 = scalar_select %p40, %s39, 1
    %s42 = smul.addr %s41, 8
    %s43 = scalar_lea.vmem %s0, %s42
    %s44 = sadd.s32 0, 0
    %p45 = scmp.lt.s32.totalorder %s44, 0
    %s46 = scalar_select %p45, %s44, 0
    %s47 = smul.u32 2, %s46
    %p48 = scmp.lt.s32.totalorder %s47, 1
    %s49 = scalar_select %p48, %s47, 1
    %s50 = smul.addr %s49, 8
    %s51 = scalar_lea.vmem %s1, %s50
    %s52 = sadd.s32 0, 0
    %p53 = scmp.lt.s32.totalorder %s52, 0
    %s54 = scalar_select %p53, %s52, 0
    %s55 = smul.u32 2, %s54
    %p56 = scmp.lt.s32.totalorder %s55, 1
    %s57 = scalar_select %p56, %s55, 1
    %s58 = smul.addr %s57, 8
    %s59 = scalar_lea.vmem %s0, %s58
    %s60 = sadd.s32 0, 0
    %p61 = scmp.lt.s32.totalorder %s60, 0
    %s62 = scalar_select %p61, %s60, 0
    %s63 = smul.u32 2, %s62
    %s64 = sadd.s32 0, 0
    %p65 = scmp.lt.s32.totalorder %s64, 0
    %s66 = scalar_select %p65, %s64, 0
    %s67 = smul.u32 2, %s66
    %p68 = scmp.lt.s32.totalorder %s67, 1
    %s69 = scalar_select %p68, %s67, 1
    %s70 = smul.addr %s69, 8
    %s71 = scalar_lea.vmem %s1, %s70
    %s72 = sadd.s32 0, 0
    %p73 = scmp.lt.s32.totalorder %s72, 0
    %s74 = scalar_select %p73, %s72, 0
    %s75 = smul.u32 2, %s74
    %p76 = scmp.eq.s32.totalorder 0, 0
    // Predicated region
    $region10: #{tpu_custom_call.1} parent=1 // pred_check
      %p77 = pneg %p76
    $region11: #{tpu_custom_call.1} parent=1 // pred_check_branch
      %79 = sbr.rel (%p77) target = $region13
    $region12: #{tpu_custom_call.1} parent=1 // pred_region
      %vm80 = vcmask 0
      %81 = vst.msk [vmem:[#allocation2] sm:$0x1] %vm80, 0.0
    $region13: #{tpu_custom_call.1} parent=1 // pred_fallthru
      _
    %v82 = vld [vmem:[%s59] sm:$0xff]
    %v83 = vld [vmem:[%s59 + $0x8] sm:$0xff]
    %v84 = vld [vmem:[%s71] sm:$0xff]
    %v85 = vld [vmem:[%s71 + $0x8] sm:$0xff]
    %v86 = vlaneseq
    %v87 = vand.u32 %v86, 127
    %88 = vset.pattern.permute.xlu0 0
    %89 = vperm.xlu0 %88, %v84
    %v90 = vpop.permute.xlu0 %89
    %91 = vset.pattern.permute.xlu0 0
    %92 = vperm.xlu0 %91, %v85
    %v93 = vpop.permute.xlu0 %92
    %vm94 = vcmp.eq.s32.totalorder %v87, %v90
    %vm95 = vcmp.eq.s32.totalorder %v87, %v93
    %v96 = vsel %vm94, %v82, 0.0
    %v97 = vsel %vm95, %v83, 0.0
    %vm98 = vcmask 261120
    %v99 = vsel %vm98, %v96, 0.0
    %100 = vadd.xlane.f32.xlu0 %v99
    %v101 = vpop.xlane.xlu0 %100
    %v102 = vsel %vm98, %v97, 0.0
    %103 = vadd.xlane.f32.xlu0 %v102
    %v104 = vpop.xlane.xlu0 %103
    %v105 = vsel %vm98, %v82, -inf
    %106 = vmax.xlane.f32.xlu0 %v105
    %v107 = vpop.xlane.xlu0 %106
    %v108 = vsel %vm98, %v83, -inf
    %109 = vmax.xlane.f32.xlu0 %v108
    %v110 = vpop.xlane.xlu0 %109
    %v111 = vsub.f32 %v82, %v107
    %v112 = vsub.f32 %v83, %v110
    %v113 = vmul.f32 %v111, 1.442695
    %v114 = vpow.pop %v113
    %v115 = vmul.f32 %v112, 1.442695
    %v116 = vpow.pop %v115
    %v117 = vsel %vm98, %v114, 0.0
    %118 = vadd.xlane.f32.xlu0 %v117
    %v119 = vpop.xlane.xlu0 %118
    %v120 = vsel %vm98, %v116, 0.0
    %121 = vadd.xlane.f32.xlu0 %v120
    %v122 = vpop.xlane.xlu0 %121
    %v123 = vlog2.pop %v119
    %v124 = vmul.f32 %v123, 0.6931472
    %v125 = vlog2.pop %v122
    %v126 = vmul.f32 %v125, 0.6931472
    %v127 = vadd.f32 %v107, %v124
    %v128 = vadd.f32 %v110, %v126
    %s129 = sadd.s32 0, 0
    %s130 = smul.u32 %s129, 16
    %v131 = vlaneseq
    %v132 = vshrl.u32 %v131, 7
    %v133 = vadd.s32 %v132, 8
    %v134 = vstv %s130
    %v135 = vadd.s32 %v134, %v132
    %v136 = vadd.s32 %v134, %v133
    %vm137 = vcmp.lt.s32.totalorder %v135, 16
    %vm138 = vcmp.lt.s32.totalorder %v136, 16
    %v139 = vsub.f32 %v127, %v101
    %v140 = vsub.f32 %v128, %v104
    %v141 = vsel %vm137, %v139, 0.0
    %v142 = vsel %vm138, %v140, 0.0
    %vm143 = vcmask 7168
    %v144 = vsel %vm143, %v141, 0.0
    %v145 = vsel %vm143, %v142, 0.0
    %v146 = vadd.f32 %v144, %v145
    %147 = vadd.xlane.f32.xlu0 %v146
    %v148 = vpop.xlane.xlu0 %147
    %v149 = vrot.slane %v148, 4
    %v150 = vadd.f32 %v148, %v149
    %v151 = vrot.slane %v150, 2
    %v152 = vadd.f32 %v150, %v151
    %v153 = vrot.slane %v152, 1
    %v154 = vadd.f32 %v152, %v153
    %s155 = vtos %v154
    %v156 = vstv %s155
    %v157 = vld [vmem:[#allocation2] sm:$0x1]
    %v158 = vadd.f32 %v157, %v156
    %vm159 = vcmask 0
    %160 = vst.msk [vmem:[#allocation2] sm:$0x1] %vm159, %v158
    // Predicated region
    $region14: #{tpu_custom_call.1} parent=1 // pred_check
      %p161 = pneg %p76
    $region15: #{tpu_custom_call.1} parent=1 // pred_check_branch
      %163 = sbr.rel (%p161) target = $region17
    $region16: #{tpu_custom_call.1} parent=1 // pred_region
      %v164 = vld [vmem:[#allocation2] sm:$0x1]
      %165 = vst.msk [vmem:[#allocation3] sm:$0x1] %vm159, %v164
    $region17: #{tpu_custom_call.1} parent=1 // pred_fallthru
      _
    // Predicated region
    $region18: #{tpu_custom_call.1} parent=1 // pred_check
      _
    $region19: #{tpu_custom_call.1} parent=1 // pred_check_branch
      %167 = sbr.rel (0) target = $region21
    $region20: #{tpu_custom_call.1} parent=1 // pred_region
      %s169 = ssub.s32 16, 16
      %170 = vsyncadd [#allocation4], %s169
      %s172 = sshll.u32 [#allocation3], 4
      %s173 = int_to_ptr.vmem [resolvable:$true] %s172
      %175 = dma.vmem_to_hbm [thread:$0]  %s173, 16, %s2, [#allocation4]
    $region21: #{tpu_custom_call.1} parent=1 // pred_fallthru
      _
    // Predicated region
    $region22: #{tpu_custom_call.1} parent=1 // pred_check
      _
    $region23: #{tpu_custom_call.1} parent=1 // pred_check_branch
      %177 = sbr.rel (0) target = $region25
    $region24: #{tpu_custom_call.1} parent=1 // pred_region
      %178 = dma.done [#allocation4], 16
    $region25: #{tpu_custom_call.1} parent=1 // pred_fallthru
      _
    %179 = vsyncpa [#allocation4], 1

</llo_original>
